<compile_context>
chip_gen: v7x
topology: tpu7x:2x2x1
jax: 0.10.0
libtpu: 0.0.40
codegen_flags: <defaults>
</compile_context>

<pallas_src>
import jax
import jax.numpy as jnp
from jax.experimental import pallas as pl
from jax.experimental.pallas import tpu as pltpu


def _round_up(n, m):
    return ((n + m - 1) // m) * m


def mlp_kernel(xT_ref, w1T_ref, b1_ref, w2T_ref, b2_ref, w3_ref, b3_ref, oT_ref):
    # xT_ref: (D, TB) -- batch on the lane axis.
    xT = xT_ref[...]
    # (16, D) @ (D, TB) -> (16, TB)
    h1 = jnp.dot(w1T_ref[...], xT, preferred_element_type=jnp.float32) + b1_ref[...]
    h1 = jnp.maximum(h1, 0.0)
    # (8, 16) @ (16, TB) -> (8, TB)
    h2 = jnp.dot(w2T_ref[...], h1, preferred_element_type=jnp.float32) + b2_ref[...]
    h2 = jnp.maximum(h2, 0.0)
    # Final Linear(8, 1): VPU multiply + sublane reduce (no MXU pass for 8x1).
    out = jnp.sum(h2 * w3_ref[...], axis=0, keepdims=True) + b3_ref[0]   # (1, TB)
    oT_ref[...] = out.astype(oT_ref.dtype)


def my_model_forward(x, params, tb_max=2048):
    """Equivalent of My_Model.forward; x is (B, D) as in the PyTorch module."""
    w1T, b1, w2T, b2, w3, b3 = params
    B, D = x.shape

    # Batch tile: a multiple of the 128-lane width, capped for VMEM headroom.
    TB = min(tb_max, _round_up(B, 128))
    B_pad = _round_up(B, TB)

    # Layout plumbing in the wrapper: put the batch onto the lane axis.
    xT = x.T                                   # (D, B)
    if B_pad != B:
        xT = jnp.pad(xT, ((0, 0), (0, B_pad - B)))

    grid = (B_pad // TB,)

    outT = pl.pallas_call(
        mlp_kernel,
        out_shape=jax.ShapeDtypeStruct((1, B_pad), jnp.float32),
        grid=grid,
        in_specs=[
            pl.BlockSpec((D, TB), lambda i: (0, i)),            # xT: tiled over batch
            pl.BlockSpec((16, D), lambda i: (0, 0)),            # w1T: VMEM-resident
            pl.BlockSpec((16, 1), lambda i: (0, 0)),            # b1 (column, bcast over lanes)
            pl.BlockSpec((8, 16), lambda i: (0, 0)),            # w2T
            pl.BlockSpec((8, 1), lambda i: (0, 0)),             # b2
            pl.BlockSpec((8, 1), lambda i: (0, 0)),             # w3 (column)
            pl.BlockSpec(memory_space=pltpu.MemorySpace.SMEM),  # b3 scalar in SMEM
        ],
        out_specs=pl.BlockSpec((1, TB), lambda i: (0, i)),
        compiler_params=pltpu.CompilerParams(
            dimension_semantics=("parallel",)),
    )(xT, w1T, b1, w2T, b2, w3, b3)

    # squeeze(1) in the torch module + drop batch padding.
    return outT[0, :B]


def init_params(key, input_dim):
    """Deterministic synthetic init matching the torch layer shapes
    (Linear(input_dim,16), Linear(16,8), Linear(8,1)), stored in the
    kernel-friendly transposed layouts:
      w1T (16, D), b1 (16, 1), w2T (8, 16), b2 (8, 1), w3 (8, 1), b3 (1,)"""
    k1, k2, k3, k4, k5, k6 = jax.random.split(key, 6)
    w1T = jax.random.normal(k1, (16, input_dim), jnp.float32) * 0.1
    b1 = jax.random.normal(k2, (16, 1), jnp.float32) * 0.1
    w2T = jax.random.normal(k3, (8, 16), jnp.float32) * 0.1
    b2 = jax.random.normal(k4, (8, 1), jnp.float32) * 0.1
    w3 = jax.random.normal(k5, (8, 1), jnp.float32) * 0.1
    b3 = jax.random.normal(k6, (1,), jnp.float32) * 0.1
    return (w1T, b1, w2T, b2, w3, b3)


if __name__ == "__main__":
    batch = 8
    input_dim = 32

    key = jax.random.PRNGKey(0)
    kx, kp = jax.random.split(key)
    x = jax.random.normal(kx, (batch, input_dim), jnp.float32)
    params = init_params(kp, input_dim)

    y = my_model_forward(x, params)
    y = jax.block_until_ready(y)

    # reference check in plain JAX (standard row-major orientation)
    w1T, b1, w2T, b2, w3, b3 = params
    h1 = jnp.maximum(x @ w1T.T + b1[:, 0], 0.0)
    h2 = jnp.maximum(h1 @ w2T.T + b2[:, 0], 0.0)
    ref = h2 @ w3[:, 0] + b3[0]
    assert y.shape == (batch,)
    assert jnp.allclose(y, ref, atol=1e-5, rtol=1e-5)

    print("KERNEL_OK")
</pallas_src>

<mosaic_0001>
module attributes {stable_mosaic.version = 11 : i64} {
  func.func @mlp_kernel(%arg0: i32, %arg1: memref<32x128xf32, #tpu.memory_space<vmem>>, %arg2: memref<16x32xf32, #tpu.memory_space<vmem>>, %arg3: memref<16x1xf32, #tpu.memory_space<vmem>>, %arg4: memref<8x16xf32, #tpu.memory_space<vmem>>, %arg5: memref<8x1xf32, #tpu.memory_space<vmem>>, %arg6: memref<8x1xf32, #tpu.memory_space<vmem>>, %arg7: memref<1xf32, #tpu.memory_space<smem>>, %arg8: memref<1x128xf32, #tpu.memory_space<vmem>>) attributes {dimension_semantics = [#tpu.dimension_semantics<parallel>], iteration_bounds = array<i64: 1>, scalar_prefetch = 0 : i64, scratch_operands = 0 : i64, tpu.core_type = #tpu.core_type<tc>, window_params = [{transform_indices = @transform_0, window_bounds = array<i64: 32, 128>}, {pipeline_mode = #tpu.pipeline_mode<synchronous>, transform_indices = @transform_1, window_bounds = array<i64: 16, 32>}, {pipeline_mode = #tpu.pipeline_mode<synchronous>, transform_indices = @transform_2, window_bounds = array<i64: 16, 1>}, {pipeline_mode = #tpu.pipeline_mode<synchronous>, transform_indices = @transform_3, window_bounds = array<i64: 8, 16>}, {pipeline_mode = #tpu.pipeline_mode<synchronous>, transform_indices = @transform_4, window_bounds = array<i64: 8, 1>}, {pipeline_mode = #tpu.pipeline_mode<synchronous>, transform_indices = @transform_5, window_bounds = array<i64: 8, 1>}, {transform_indices = @transform_6, window_bounds = array<i64: 1>}, {transform_indices = @transform_7, window_bounds = array<i64: 1, 128>}]} {
    %c0 = arith.constant 0 : index
    %c0_0 = arith.constant 0 : index
    %0 = vector.load %arg1[%c0, %c0_0] : memref<32x128xf32, #tpu.memory_space<vmem>>, vector<32x128xf32>
    %c0_1 = arith.constant 0 : index
    %c0_2 = arith.constant 0 : index
    %1 = vector.load %arg2[%c0_1, %c0_2] : memref<16x32xf32, #tpu.memory_space<vmem>>, vector<16x32xf32>
    %cst = arith.constant dense<0.000000e+00> : vector<16x128xf32>
    %2 = tpu.matmul %1, %0, %cst {dimension_numbers = #tpu.dot_dimension_numbers<[1], [0], [0], [1], [0, 0, 1, 1], [], []>} : vector<16x32xf32>, vector<32x128xf32>, vector<16x128xf32> -> vector<16x128xf32>
    %c0_3 = arith.constant 0 : index
    %c0_4 = arith.constant 0 : index
    %3 = vector.load %arg3[%c0_3, %c0_4] : memref<16x1xf32, #tpu.memory_space<vmem>>, vector<16x1xf32>
    %4 = vector.broadcast %3 : vector<16x1xf32> to vector<16x128xf32>
    %5 = arith.addf %2, %4 : vector<16x128xf32>
    %cst_5 = arith.constant 0.000000e+00 : f32
    %6 = vector.broadcast %cst_5 : f32 to vector<16x128xf32>
    %7 = arith.maximumf %5, %6 : vector<16x128xf32>
    %c0_6 = arith.constant 0 : index
    %c0_7 = arith.constant 0 : index
    %8 = vector.load %arg4[%c0_6, %c0_7] : memref<8x16xf32, #tpu.memory_space<vmem>>, vector<8x16xf32>
    %cst_8 = arith.constant dense<0.000000e+00> : vector<8x128xf32>
    %9 = tpu.matmul %8, %7, %cst_8 {dimension_numbers = #tpu.dot_dimension_numbers<[1], [0], [0], [1], [0, 0, 1, 1], [], []>} : vector<8x16xf32>, vector<16x128xf32>, vector<8x128xf32> -> vector<8x128xf32>
    %c0_9 = arith.constant 0 : index
    %c0_10 = arith.constant 0 : index
    %10 = vector.load %arg5[%c0_9, %c0_10] : memref<8x1xf32, #tpu.memory_space<vmem>>, vector<8x1xf32>
    %11 = vector.broadcast %10 : vector<8x1xf32> to vector<8x128xf32>
    %12 = arith.addf %9, %11 : vector<8x128xf32>
    %cst_11 = arith.constant 0.000000e+00 : f32
    %13 = vector.broadcast %cst_11 : f32 to vector<8x128xf32>
    %14 = arith.maximumf %12, %13 : vector<8x128xf32>
    %c0_12 = arith.constant 0 : index
    %c0_13 = arith.constant 0 : index
    %15 = vector.load %arg6[%c0_12, %c0_13] : memref<8x1xf32, #tpu.memory_space<vmem>>, vector<8x1xf32>
    %16 = vector.broadcast %15 : vector<8x1xf32> to vector<8x128xf32>
    %17 = arith.mulf %14, %16 : vector<8x128xf32>
    %cst_14 = arith.constant dense<0.000000e+00> : vector<128xf32>
    %18 = vector.multi_reduction <add>, %17, %cst_14 [0] : vector<8x128xf32> to vector<128xf32>
    %19 = vector.shape_cast %18 : vector<128xf32> to vector<1x128xf32>
    %c0_15 = arith.constant 0 : index
    %20 = memref.load %arg7[%c0_15] : memref<1xf32, #tpu.memory_space<smem>>
    %21 = vector.broadcast %20 : f32 to vector<1x128xf32>
    %22 = arith.addf %19, %21 : vector<1x128xf32>
    %c0_16 = arith.constant 0 : index
    %c0_17 = arith.constant 0 : index
    %23 = vector.load %arg8[%c0_16, %c0_17] : memref<1x128xf32, #tpu.memory_space<vmem>>, vector<1x128xf32>
    tpu.vector_store %arg8[%c0_16, %c0_17], %22 {strides = array<i32>} : memref<1x128xf32, #tpu.memory_space<vmem>>, vector<1x128xf32>,
    return
  }
  func.func @transform_0(%arg0: i32) -> (i32, i32) {
    %c0_i32 = arith.constant 0 : i32
    %c0_i32_0 = arith.constant 0 : i32
    return %c0_i32, %arg0 : i32, i32
  }
  func.func @transform_1(%arg0: i32) -> (i32, i32) {
    %c0_i32 = arith.constant 0 : i32
    %c0_i32_0 = arith.constant 0 : i32
    %c0_i32_1 = arith.constant 0 : i32
    return %c0_i32, %c0_i32_0 : i32, i32
  }
  func.func @transform_2(%arg0: i32) -> (i32, i32) {
    %c0_i32 = arith.constant 0 : i32
    %c0_i32_0 = arith.constant 0 : i32
    %c0_i32_1 = arith.constant 0 : i32
    return %c0_i32, %c0_i32_0 : i32, i32
  }
  func.func @transform_3(%arg0: i32) -> (i32, i32) {
    %c0_i32 = arith.constant 0 : i32
    %c0_i32_0 = arith.constant 0 : i32
    %c0_i32_1 = arith.constant 0 : i32
    return %c0_i32, %c0_i32_0 : i32, i32
  }
  func.func @transform_4(%arg0: i32) -> (i32, i32) {
    %c0_i32 = arith.constant 0 : i32
    %c0_i32_0 = arith.constant 0 : i32
    %c0_i32_1 = arith.constant 0 : i32
    return %c0_i32, %c0_i32_0 : i32, i32
  }
  func.func @transform_5(%arg0: i32) -> (i32, i32) {
    %c0_i32 = arith.constant 0 : i32
    %c0_i32_0 = arith.constant 0 : i32
    %c0_i32_1 = arith.constant 0 : i32
    return %c0_i32, %c0_i32_0 : i32, i32
  }
  func.func @transform_6(%arg0: i32) -> i32 {
    %c0_i32 = arith.constant 0 : i32
    %c0_i32_0 = arith.constant 0 : i32
    return %c0_i32 : i32
  }
  func.func @transform_7(%arg0: i32) -> (i32, i32) {
    %c0_i32 = arith.constant 0 : i32
    %c0_i32_0 = arith.constant 0 : i32
    return %c0_i32, %arg0 : i32, i32
  }
}

</mosaic_0001>

<llo_original>
// kernel: tpu_custom_call.1
$region0: #{tpu_custom_call.1}
  #allocation0 [shape = 'u32[]', space=smem, size = 0x4, offset = 0x4, fixed_abs, tag = 'smem constant byte address 0x4 - core index']
  #allocation1 [shape = 'u32[144,128]{1,0:T(1,128)}', space=vmem, size = 0x12000, scoped, tag = 'internal scratch']
  #allocation2 [shape = 'f32[1]{0:T(128)S(6)}', space=smem, size = 0x200, scoped, tag = 'scoped memory for tpu_custom_call.1']
  %s0 = inlined_call_operand.vmem [shape: f32[32,128], index: 0, kind: input, shape index: {}]
  %s1 = inlined_call_operand.hbm [shape: f32[16,32], index: 1, kind: input, shape index: {}]
  %s2 = inlined_call_operand.vmem [shape: f32[16,1], index: 2, kind: input, shape index: {}]
  %s3 = inlined_call_operand.vmem [shape: f32[8,16], index: 3, kind: input, shape index: {}]
  %s4 = inlined_call_operand.vmem [shape: f32[8,1], index: 4, kind: input, shape index: {}]
  %s5 = inlined_call_operand.vmem [shape: f32[8,1], index: 5, kind: input, shape index: {}]
  %s6 = inlined_call_operand.<no memory space> [shape: f32[1], index: 6, kind: input, shape index: {}]
  %s7 = inlined_call_operand.hbm [shape: f32[1,128], index: 7, kind: output, shape index: {}]
  %s8 = sld [smem:[#allocation0]]
  $region42: #{tpu_custom_call.1} parent=0
    _
  %s10 = ssub.s32 1, %s8
  %s11 = scalar_select 0, %s10, %s8
  %12 = sst [smem:[#allocation2]] %s6
  $region1: #{tpu_custom_call.1} parent=0
    #allocation3 [shape = 'u8[8192]{0}', space=vmem, size = 0x2000, scoped, tag = 'input window, operand 1, single buffered']
    #allocation4 [shape = 's32[1]{0}', space=sflag, size = 0x4, scoped, tag = 'scoped memory for tpu_custom_call.1']
    #allocation5 [shape = 's32[1]{0}', space=sflag, size = 0x4, scoped, tag = 'scoped memory for tpu_custom_call.1']
    #allocation6 [shape = 'u8[512]{0}', space=vmem, size = 0x400, scoped, tag = 'output window, operand 0, single buffered']
    %13 = vsyncpa [#allocation4], 0
    %14 = vsyncpa [#allocation5], 0
    // Predicated region
    $region2: #{tpu_custom_call.1} parent=1 // pred_check
      _
    $region3: #{tpu_custom_call.1} parent=1 // pred_check_branch
      %16 = sbr.rel (0) target = $region5
    $region4: #{tpu_custom_call.1} parent=1 // pred_region
      _
    $region5: #{tpu_custom_call.1} parent=1 // pred_fallthru
      _
    // Predicated region
    $region6: #{tpu_custom_call.1} parent=1 // pred_check
      _
    $region7: #{tpu_custom_call.1} parent=1 // pred_check_branch
      %18 = sbr.rel (0) target = $region9
    $region8: #{tpu_custom_call.1} parent=1 // pred_region
      %s20 = ssub.s32 256, 256
      %21 = vsyncadd [#allocation4], %s20
      %s22 = sshll.u32 [#allocation3], 4
      %s23 = int_to_ptr.vmem [resolvable:$true] %s22
      %28 = dma.hbm_to_vmem [thread:$0]  %s1, 256, %s23, [#allocation4], 128, 128, 8
    $region9: #{tpu_custom_call.1} parent=1 // pred_fallthru
      _
    // Predicated region
    $region10: #{tpu_custom_call.1} parent=1 // pred_check
      _
    $region11: #{tpu_custom_call.1} parent=1 // pred_check_branch
      %30 = sbr.rel (0) target = $region13
    $region12: #{tpu_custom_call.1} parent=1 // pred_region
      _
    $region13: #{tpu_custom_call.1} parent=1 // pred_fallthru
      _
    // Predicated region
    $region14: #{tpu_custom_call.1} parent=1 // pred_check
      _
    $region15: #{tpu_custom_call.1} parent=1 // pred_check_branch
      %32 = sbr.rel (0) target = $region17
    $region16: #{tpu_custom_call.1} parent=1 // pred_region
      _
    $region17: #{tpu_custom_call.1} parent=1 // pred_fallthru
      _
    // Predicated region
    $region18: #{tpu_custom_call.1} parent=1 // pred_check
      _
    $region19: #{tpu_custom_call.1} parent=1 // pred_check_branch
      %34 = sbr.rel (0) target = $region21
    $region20: #{tpu_custom_call.1} parent=1 // pred_region
      _
    $region21: #{tpu_custom_call.1} parent=1 // pred_fallthru
      _
    // Predicated region
    $region22: #{tpu_custom_call.1} parent=1 // pred_check
      _
    $region23: #{tpu_custom_call.1} parent=1 // pred_check_branch
      %36 = sbr.rel (0) target = $region25
    $region24: #{tpu_custom_call.1} parent=1 // pred_region
      _
    $region25: #{tpu_custom_call.1} parent=1 // pred_fallthru
      _
    // Predicated region
    $region26: #{tpu_custom_call.1} parent=1 // pred_check
      _
    $region27: #{tpu_custom_call.1} parent=1 // pred_check_branch
      %38 = sbr.rel (0) target = $region29
    $region28: #{tpu_custom_call.1} parent=1 // pred_region
      _
    $region29: #{tpu_custom_call.1} parent=1 // pred_fallthru
      _
    // Predicated region
    $region30: #{tpu_custom_call.1} parent=1 // pred_check
      _
    $region31: #{tpu_custom_call.1} parent=1 // pred_check_branch
      %40 = sbr.rel (0) target = $region33
    $region32: #{tpu_custom_call.1} parent=1 // pred_region
      %41 = dma.done [#allocation4], 256
    $region33: #{tpu_custom_call.1} parent=1 // pred_fallthru
      _
    %v42 = vld [vmem:[%s0] sm:$0xff]
    %v43 = vld [vmem:[%s0 + $0x8] sm:$0xff]
    %v44 = vld [vmem:[%s0 + $0x10] sm:$0xff]
    %v45 = vld [vmem:[%s0 + $0x18] sm:$0xff]
    %v46 = vld [vmem:[#allocation3] sm:$0xff]
    %v47 = vld [vmem:[#allocation3 + $0x8] sm:$0xff]
    %v48 = vld [vmem:[%s2] sm:$0xff]
    %v49 = vld [vmem:[%s2 + $0x8] sm:$0xff]
    %51 = vset.pattern.permute.xlu0 0
    %52 = vperm.xlu0 %51, %v48
    %v53 = vpop.permute.xlu0 %52
    %56 = vset.pattern.permute.xlu0 0
    %57 = vperm.xlu0 %56, %v49
    %v58 = vpop.permute.xlu0 %57
    %vm60 = vcmask 261120
    %v62 = vsel %vm60, %v46, 0
    %v65 = vsel %vm60, %v47, 0
    %67 = vmatprep.subr.mxu0 0.0
    %68 = vmatpush1.msra.mxu0 %v42
    %69 = vmatprep.subr.mxu0 0.0
    %70 = vmatpush1.msra.mxu0 %v43
    %71 = vmatprep.subr.mxu0 0.0
    %72 = vmatpush1.msra.mxu0 %v44
    %73 = vmatprep.subr.mxu0 0.0
    %74 = vmatpush1.msra.mxu0 %v45
    %75 = vmatprep.subr.mxu0 0.0
    %76 = vmatpush1.msra.mxu0 0.0
    %77 = vmatprep.subr.mxu0 0.0
    %78 = vmatpush1.msra.mxu0 0.0
    %79 = vmatprep.subr.mxu0 0.0
    %80 = vmatpush1.msra.mxu0 0.0
    %81 = vmatprep.subr.mxu0 0.0
    %82 = vmatpush1.msra.mxu0 0.0
    %83 = vmatprep.subr.mxu0 0.0
    %84 = vmatpush1.msra.mxu0 0.0
    %85 = vmatprep.subr.mxu0 0.0
    %86 = vmatpush1.msra.mxu0 0.0
    %87 = vmatprep.subr.mxu0 0.0
    %88 = vmatpush1.msra.mxu0 0.0
    %89 = vmatprep.subr.mxu0 0.0
    %90 = vmatpush1.msra.mxu0 0.0
    %91 = vmatprep.subr.mxu0 0.0
    %92 = vmatpush1.msra.mxu0 0.0
    %93 = vmatprep.subr.mxu0 0.0
    %94 = vmatpush1.msra.mxu0 0.0
    %95 = vmatprep.subr.mxu0 0.0
    %96 = vmatpush1.msra.mxu0 0.0
    %97 = vmatprep.subr.mxu0 0.0
    %98 = vmatpush1.msra.mxu0 0.0
    %99 = vmatprep.subr.mxu0 0.0
    %100 = vmatpush1.msra.mxu0 0.0
    %101 = vmatprep.subr.mxu0 0.0
    %102 = vmatpush1.msra.mxu0 0.0
    %103 = vmatprep.subr.mxu0 0.0
    %104 = vmatpush1.msra.mxu0 0.0
    %105 = vmatprep.subr.mxu0 0.0
    %106 = vmatpush1.msra.mxu0 0.0
    %107 = vmatprep.subr.mxu0 0.0
    %108 = vmatpush1.msra.mxu0 0.0
    %109 = vmatprep.subr.mxu0 0.0
    %110 = vmatpush1.msra.mxu0 0.0
    %111 = vmatprep.subr.mxu0 0.0
    %112 = vmatpush1.msra.mxu0 0.0
    %113 = vmatprep.subr.mxu0 0.0
    %114 = vmatpush1.msra.mxu0 0.0
    %115 = vmatprep.subr.mxu0 0.0
    %116 = vmatpush1.msra.mxu0 0.0
    %117 = vmatprep.subr.mxu0 0.0
    %118 = vmatpush1.msra.mxu0 0.0
    %119 = vmatprep.subr.mxu0 0.0
    %120 = vmatpush1.msra.mxu0 0.0
    %121 = vmatprep.subr.mxu0 0.0
    %122 = vmatpush1.msra.mxu0 0.0
    %123 = vmatprep.subr.mxu0 0.0
    %124 = vmatpush1.msra.mxu0 0.0
    %125 = vmatprep.subr.mxu0 0.0
    %126 = vmatpush1.msra.mxu0 0.0
    %127 = vmatprep.subr.mxu0 0.0
    %128 = vmatpush1.msra.mxu0 0.0
    %129 = vmatprep.subr.mxu0 0.0
    %130 = vmatpush1.msra.mxu0 0.0
    %131 = vmatprep.mubr.f32.mxu0 0.0
    %132 = vmatmul.mubr.f32.gmra.mrb[0].mxu0 %v62
    %v133 = vpop.f32.mrb[0].mxu0
    %v134 = vadd.f32 %v53, %v133
    %v135 = vpop.f32.mrb[0].mxu0
    %136 = vmatprep.mubr.f32.mxu0 0.0
    %137 = vmatmul.mubr.f32.gmra.mrb[0].mxu0 %v65
    %v138 = vpop.f32.mrb[0].mxu0
    %v139 = vadd.f32 %v58, %v138
    %v140 = vpop.f32.mrb[0].mxu0
    %141 = vdwg.mxu0
    %v142 = vmax.f32 %v134, 0.0
    %v143 = vmax.f32 %v139, 0.0
    %v144 = vld [vmem:[%s3] sm:$0xff]
    %v145 = vld [vmem:[%s4] sm:$0xff]
    %147 = vset.pattern.permute.xlu0 0
    %148 = vperm.xlu0 %147, %v145
    %v149 = vpop.permute.xlu0 %148
    %vm151 = vcmask 130048
    %v153 = vsel %vm151, %v144, 0
    %155 = vmatprep.subr.mxu0 0.0
    %156 = vmatpush1.msra.mxu0 %v142
    %157 = vmatprep.subr.mxu0 0.0
    %158 = vmatpush1.msra.mxu0 %v143
    %159 = vmatprep.subr.mxu0 0.0
    %160 = vmatpush1.msra.mxu0 0.0
    %161 = vmatprep.subr.mxu0 0.0
    %162 = vmatpush1.msra.mxu0 0.0
    %163 = vmatprep.subr.mxu0 0.0
    %164 = vmatpush1.msra.mxu0 0.0
    %165 = vmatprep.subr.mxu0 0.0
    %166 = vmatpush1.msra.mxu0 0.0
    %167 = vmatprep.subr.mxu0 0.0
    %168 = vmatpush1.msra.mxu0 0.0
    %169 = vmatprep.subr.mxu0 0.0
    %170 = vmatpush1.msra.mxu0 0.0
    %171 = vmatprep.subr.mxu0 0.0
    %172 = vmatpush1.msra.mxu0 0.0
    %173 = vmatprep.subr.mxu0 0.0
    %174 = vmatpush1.msra.mxu0 0.0
    %175 = vmatprep.subr.mxu0 0.0
    %176 = vmatpush1.msra.mxu0 0.0
    %177 = vmatprep.subr.mxu0 0.0
    %178 = vmatpush1.msra.mxu0 0.0
    %179 = vmatprep.subr.mxu0 0.0
    %180 = vmatpush1.msra.mxu0 0.0
    %181 = vmatprep.subr.mxu0 0.0
    %182 = vmatpush1.msra.mxu0 0.0
    %183 = vmatprep.subr.mxu0 0.0
    %184 = vmatpush1.msra.mxu0 0.0
    %185 = vmatprep.subr.mxu0 0.0
    %186 = vmatpush1.msra.mxu0 0.0
    %187 = vmatprep.subr.mxu0 0.0
    %188 = vmatpush1.msra.mxu0 0.0
    %189 = vmatprep.subr.mxu0 0.0
    %190 = vmatpush1.msra.mxu0 0.0
    %191 = vmatprep.subr.mxu0 0.0
    %192 = vmatpush1.msra.mxu0 0.0
    %193 = vmatprep.subr.mxu0 0.0
    %194 = vmatpush1.msra.mxu0 0.0
    %195 = vmatprep.subr.mxu0 0.0
    %196 = vmatpush1.msra.mxu0 0.0
    %197 = vmatprep.subr.mxu0 0.0
    %198 = vmatpush1.msra.mxu0 0.0
    %199 = vmatprep.subr.mxu0 0.0
    %200 = vmatpush1.msra.mxu0 0.0
    %201 = vmatprep.subr.mxu0 0.0
    %202 = vmatpush1.msra.mxu0 0.0
    %203 = vmatprep.subr.mxu0 0.0
    %204 = vmatpush1.msra.mxu0 0.0
    %205 = vmatprep.subr.mxu0 0.0
    %206 = vmatpush1.msra.mxu0 0.0
    %207 = vmatprep.subr.mxu0 0.0
    %208 = vmatpush1.msra.mxu0 0.0
    %209 = vmatprep.subr.mxu0 0.0
    %210 = vmatpush1.msra.mxu0 0.0
    %211 = vmatprep.subr.mxu0 0.0
    %212 = vmatpush1.msra.mxu0 0.0
    %213 = vmatprep.subr.mxu0 0.0
    %214 = vmatpush1.msra.mxu0 0.0
    %215 = vmatprep.subr.mxu0 0.0
    %216 = vmatpush1.msra.mxu0 0.0
    %217 = vmatprep.subr.mxu0 0.0
    %218 = vmatpush1.msra.mxu0 0.0
    %219 = vmatprep.mubr.f32.mxu0 0.0
    %220 = vmatmul.mubr.f32.gmra.mrb[0].mxu0 %v153
    %v221 = vpop.f32.mrb[0].mxu0
    %v222 = vadd.f32 %v149, %v221
    %v223 = vpop.f32.mrb[0].mxu0
    %224 = vdwg.mxu0
    %v225 = vmax.f32 %v222, 0.0
    %v226 = vld [vmem:[%s5] sm:$0xff]
    %228 = vset.pattern.permute.xlu0 0
    %229 = vperm.xlu0 %228, %v226
    %v230 = vpop.permute.xlu0 %229
    %v232 = vmul.f32 %v225, %v230
    %v233 = vrot.slane %v232, 4
    %v234 = vadd.f32 %v232, %v233
    %v235 = vrot.slane %v234, 2
    %v236 = vadd.f32 %v234, %v235
    %v237 = vrot.slane %v236, 1
    %v238 = vadd.f32 %v236, %v237
    %s239 = sld [smem:[#allocation2]]
    %v240 = vstv %s239
    %v241 = vadd.f32 %v238, %v240
    %242 = vst [vmem:[#allocation6] sm:$0x1] %v241
    // Predicated region
    $region34: #{tpu_custom_call.1} parent=1 // pred_check
      _
    $region35: #{tpu_custom_call.1} parent=1 // pred_check_branch
      %244 = sbr.rel (0) target = $region37
    $region36: #{tpu_custom_call.1} parent=1 // pred_region
      %s246 = ssub.s32 16, 16
      %247 = vsyncadd [#allocation5], %s246
      %s249 = sshll.u32 [#allocation6], 4
      %s250 = int_to_ptr.vmem [resolvable:$true] %s249
      %252 = dma.vmem_to_hbm [thread:$0]  %s250, 16, %s7, [#allocation5]
    $region37: #{tpu_custom_call.1} parent=1 // pred_fallthru
      _
    // Predicated region
    $region38: #{tpu_custom_call.1} parent=1 // pred_check
      _
    $region39: #{tpu_custom_call.1} parent=1 // pred_check_branch
      %254 = sbr.rel (0) target = $region41
    $region40: #{tpu_custom_call.1} parent=1 // pred_region
      %255 = dma.done [#allocation5], 16
    $region41: #{tpu_custom_call.1} parent=1 // pred_fallthru
      _
    %256 = vsyncpa [#allocation4], 1
    %257 = vsyncpa [#allocation5], 1

</llo_original>
